<compile_context>
chip_gen: v5e
topology: v5e:2x2
jax: 0.10.0
libtpu: 0.0.40
codegen_flags: <defaults>
</compile_context>

<pallas_src>
import functools

import jax
import jax.numpy as jnp
from jax import lax
from jax.experimental import pallas as pl
from jax.experimental.pallas import tpu as pltpu


def _crf_loss_kernel(scores_ref, cmp_ref, mask_ref, s1_ref, selT_ref, sel_ref,
                     loss_ref, p3_ref, tg_ref,
                     *, tagset_size, batch, start_tag, end_tag, average_batch):
    T = tagset_size
    B = batch
    TB = T * B
    t = pl.program_id(0)
    last = pl.num_programs(0) - 1

    # Lane-dense per-step slab: slab[f, to*B + b] = scores[t, b, f, to].
    slab = scores_ref[0].astype(jnp.float32)                    # (T, T*B)

    # ---------------- target-path energy (fused gather) ----------------
    # cmp[0, to*B+b] = target[t,b] - to   (or -1 where mask[t,b]==0), so
    # f*T == cmp  <=>  target[t,b] == f*T + to  (and the step is unmasked).
    f_iota = lax.broadcasted_iota(jnp.int32, (T, TB), 0)
    onehot = (f_iota * T == cmp_ref[0]).astype(jnp.float32)     # (T, T*B)
    tg_step = jnp.sum(slab * onehot, axis=0, keepdims=True)     # (1, T*B)

    @pl.when(t == 0)
    def _():
        tg_ref[...] = tg_step

    @pl.when(t > 0)
    def _():
        tg_ref[...] += tg_step

    # ---------------- forward (alpha) recursion ----------------
    s1 = s1_ref[...]        # (T, T*B)  s1[to, c]  = (c // B == to)
    selT = selT_ref[...]    # (B, T*B)  selT[b, c] = (c %  B == b)
    sel = sel_ref[...]      # (T*B, B)  sel = selT.T

    def to_state(row):      # (1, T*B) indexed by to*B+b  ->  state (T_to, B)
        # Exact 0/1 selection: state[to, b] = row[0, to*B + b].
        return jnp.dot(row * s1, sel, preferred_element_type=jnp.float32)

    @pl.when(t == 0)
    def _():
        # partition0[b, to] = scores[0, b, start_tag, to]  (static row slice)
        p3_ref[...] = to_state(slab[start_tag:start_tag + 1, :])

    @pl.when(t > 0)
    def _():
        p3 = p3_ref[...]                                        # (T_from, B)
        # part_bcast[f, to*B + b] = partition[b, f]   (exact selector matmul)
        part_bcast = jnp.dot(p3, selT, preferred_element_type=jnp.float32)
        cur = slab + part_bcast                                 # (T_from, T*B)
        m = jnp.max(cur, axis=0, keepdims=True)                 # (1, T*B)
        lse = jnp.log(jnp.sum(jnp.exp(cur - m), axis=0, keepdims=True)) + m
        p3_new = to_state(lse)                                  # (T_to, B)
        keep = mask_ref[0] > 0.0                                # (1, B)
        p3_ref[...] = jnp.where(keep, p3_new, p3)               # masked_scatter_

    # ---------------- finalize: scalar loss, written once ----------------
    @pl.when(t == last)
    def _():
        p3 = p3_ref[...]
        part_sum = jnp.sum(p3[end_tag])                         # static end_tag slice
        tg_sum = jnp.sum(tg_ref[...])
        loss = part_sum - tg_sum
        if average_batch:
            loss = loss / B
        loss_ref[0, 0] = loss


def crf_loss(scores, target, mask, *, start_tag, end_tag, average_batch=True):
    """Pallas CRF NLL.

    scores: (S, B, T, T) float (f32 or bf16), target: (S, B) int,
    mask: (S, B) {0,1} (float/bool/int).
    """
    S, B, T, T2 = scores.shape
    assert T == T2
    TB = T * B

    # Lane-dense relayout (wrapper-side layout plumbing, not compute):
    #   scores_r[t, f, to*B + b] = scores[t, b, f, to]
    scores_r = jnp.transpose(scores, (0, 2, 3, 1)).reshape(S, T, TB)

    # Gather compare codes with the mask folded in: cmp[t, to*B+b] = target[t,b]-to,
    # or -1 (never matches f*T >= 0) where the step is padding.
    to_idx = jnp.arange(T, dtype=jnp.int32)
    cmp = target.astype(jnp.int32)[:, None, :] - to_idx[None, :, None]      # (S,T,B)
    mask_b = mask.astype(jnp.float32) > 0.0
    cmp = jnp.where(mask_b[:, None, :], cmp, -1).reshape(S, 1, TB)

    mask_f = mask.astype(jnp.float32).reshape(S, 1, B)

    # Constant 0/1 selector matrices (fetched once, stay resident in VMEM).
    c = jnp.arange(TB, dtype=jnp.int32)
    s1 = (c[None, :] // B == jnp.arange(T, dtype=jnp.int32)[:, None]).astype(jnp.float32)   # (T, TB)
    selT = (c[None, :] % B == jnp.arange(B, dtype=jnp.int32)[:, None]).astype(jnp.float32)  # (B, TB)
    sel = selT.T                                                                            # (TB, B)

    kernel = functools.partial(
        _crf_loss_kernel, tagset_size=T, batch=B,
        start_tag=start_tag, end_tag=end_tag, average_batch=average_batch)

    out = pl.pallas_call(
        kernel,
        out_shape=jax.ShapeDtypeStruct((1, 1), jnp.float32),
        grid=(S,),
        in_specs=[
            pl.BlockSpec((1, T, TB), lambda t: (t, 0, 0)),   # per-step scores slab
            pl.BlockSpec((1, 1, TB), lambda t: (t, 0, 0)),   # per-step gather codes
            pl.BlockSpec((1, 1, B), lambda t: (t, 0, 0)),    # per-step mask
            pl.BlockSpec((T, TB), lambda t: (0, 0)),         # s1   (resident)
            pl.BlockSpec((B, TB), lambda t: (0, 0)),         # selT (resident)
            pl.BlockSpec((TB, B), lambda t: (0, 0)),         # sel  (resident)
        ],
        out_specs=pl.BlockSpec((1, 1), lambda t: (0, 0),
                               memory_space=pltpu.MemorySpace.SMEM),
        scratch_shapes=[
            pltpu.VMEM((T, B), jnp.float32),    # partition state p3[to, b]
            pltpu.VMEM((1, TB), jnp.float32),   # target-energy accumulator
        ],
        compiler_params=pltpu.CompilerParams(
            dimension_semantics=("arbitrary",)),   # sequential alpha recursion
    )(scores_r, cmp, mask_f, s1, selT, sel)
    return out[0, 0]


def crf_loss_ref(scores, target, mask_bool, *, start_tag, end_tag, average_batch=True):
    """Pure-JAX reference mirroring the PyTorch forward exactly."""
    S, B, T, _ = scores.shape
    flat = scores.reshape(S, B, T * T)
    tg = jnp.take_along_axis(flat, target[..., None], axis=2)[..., 0]   # (S, B)
    tg_sum = jnp.sum(jnp.where(mask_bool, tg, 0.0))
    partition = scores[0, :, start_tag, :]                              # (B, T)
    for t in range(1, S):
        cur = scores[t] + partition[:, :, None]
        lse = jax.scipy.special.logsumexp(cur, axis=1)
        partition = jnp.where(mask_bool[t][:, None], lse, partition)
    part_sum = jnp.sum(partition[:, end_tag])
    loss = part_sum - tg_sum
    return loss / B if average_batch else loss


if __name__ == "__main__":
    # Deterministic synthetic setup (module __init__: y_map -> tagset_size, start/end tags).
    y_map = {"O": 0, "B": 1, "I": 2, "E": 3, "S": 4, "X": 5, "<s>": 6, "<eof>": 7}
    tagset_size = len(y_map)            # T = 8
    start_tag = y_map["<s>"]
    end_tag = y_map["<eof>"]

    seq_len, batch = 8, 2
    T = tagset_size

    key = jax.random.PRNGKey(0)
    k_scores, k_target = jax.random.split(key)

    scores = jax.random.normal(k_scores, (seq_len, batch, T, T), dtype=jnp.float32)
    target = jax.random.randint(k_target, (seq_len, batch), 0, T * T, dtype=jnp.int32)

    # mask[t, b] = 1 while t < length[b]
    lengths = jnp.array([seq_len, 5], dtype=jnp.int32)
    mask_bool = (jnp.arange(seq_len, dtype=jnp.int32)[:, None] < lengths[None, :])
    mask = mask_bool.astype(jnp.float32)

    loss = crf_loss(scores, target, mask,
                    start_tag=start_tag, end_tag=end_tag, average_batch=True)
    loss = jax.block_until_ready(loss)

    ref = crf_loss_ref(scores, target, mask_bool,
                       start_tag=start_tag, end_tag=end_tag, average_batch=True)

    assert jnp.allclose(loss, ref, rtol=1e-5, atol=1e-4), (loss, ref)
    print("KERNEL_OK")
</pallas_src>

<mosaic_0001>
module attributes {stable_mosaic.version = 11 : i64} {
  func.func @_crf_loss_kernel(%arg0: i32, %arg1: memref<1x8x16xf32, #tpu.memory_space<vmem>>, %arg2: memref<1x1x16xi32, #tpu.memory_space<vmem>>, %arg3: memref<1x1x2xf32, #tpu.memory_space<vmem>>, %arg4: memref<8x16xf32, #tpu.memory_space<vmem>>, %arg5: memref<2x16xf32, #tpu.memory_space<vmem>>, %arg6: memref<16x2xf32, #tpu.memory_space<vmem>>, %arg7: memref<1x1xf32, #tpu.memory_space<smem>>, %arg8: memref<8x2xf32, #tpu.memory_space<vmem>>, %arg9: memref<1x16xf32, #tpu.memory_space<vmem>>) attributes {dimension_semantics = [#tpu.dimension_semantics<arbitrary>], iteration_bounds = array<i64: 8>, scalar_prefetch = 0 : i64, scratch_operands = 2 : i64, tpu.core_type = #tpu.core_type<tc>, window_params = [{transform_indices = @transform_0, window_bounds = array<i64: 1, 8, 16>}, {transform_indices = @transform_1, window_bounds = array<i64: 1, 1, 16>}, {transform_indices = @transform_2, window_bounds = array<i64: 1, 1, 2>}, {pipeline_mode = #tpu.pipeline_mode<synchronous>, transform_indices = @transform_3, window_bounds = array<i64: 8, 16>}, {pipeline_mode = #tpu.pipeline_mode<synchronous>, transform_indices = @transform_4, window_bounds = array<i64: 2, 16>}, {pipeline_mode = #tpu.pipeline_mode<synchronous>, transform_indices = @transform_5, window_bounds = array<i64: 16, 2>}, {transform_indices = @transform_6, window_bounds = array<i64: 1, 1>}]} {
    %c0 = arith.constant 0 : index
    %c0_0 = arith.constant 0 : index
    %c0_1 = arith.constant 0 : index
    %0 = vector.load %arg1[%c0, %c0_0, %c0_1] : memref<1x8x16xf32, #tpu.memory_space<vmem>>, vector<1x8x16xf32>
    %1 = vector.shape_cast %0 : vector<1x8x16xf32> to vector<8x16xf32>
    %2 = tpu.iota {dimensions = array<i32: 0>} : vector<8x16xi32>
    %c8_i32 = arith.constant 8 : i32
    %3 = vector.broadcast %c8_i32 : i32 to vector<8x16xi32>
    %4 = arith.muli %2, %3 : vector<8x16xi32>
    %c0_2 = arith.constant 0 : index
    %c0_3 = arith.constant 0 : index
    %c0_4 = arith.constant 0 : index
    %5 = vector.load %arg2[%c0_2, %c0_3, %c0_4] : memref<1x1x16xi32, #tpu.memory_space<vmem>>, vector<1x1x16xi32>
    %6 = vector.shape_cast %5 : vector<1x1x16xi32> to vector<1x16xi32>
    %7 = vector.broadcast %6 : vector<1x16xi32> to vector<8x16xi32>
    %8 = arith.cmpi eq, %4, %7 : vector<8x16xi32>
    %9 = arith.extui %8 : vector<8x16xi1> to vector<8x16xi32>
    %10 = arith.sitofp %9 : vector<8x16xi32> to vector<8x16xf32>
    %11 = arith.mulf %1, %10 : vector<8x16xf32>
    %cst = arith.constant dense<0.000000e+00> : vector<16xf32>
    %12 = vector.multi_reduction <add>, %11, %cst [0] : vector<8x16xf32> to vector<16xf32>
    %13 = vector.shape_cast %12 : vector<16xf32> to vector<1x16xf32>
    %c0_i32 = arith.constant 0 : i32
    %14 = arith.cmpi eq, %arg0, %c0_i32 : i32
    %15 = arith.extui %14 : i1 to i32
    %c0_i32_5 = arith.constant 0 : i32
    %16 = arith.cmpi ne, %15, %c0_i32_5 : i32
    scf.if %16 {
      %c0_19 = arith.constant 0 : index
      %c0_20 = arith.constant 0 : index
      %32 = vector.load %arg9[%c0_19, %c0_20] : memref<1x16xf32, #tpu.memory_space<vmem>>, vector<1x16xf32>
      tpu.vector_store %arg9[%c0_19, %c0_20], %13 {strides = array<i32>} : memref<1x16xf32, #tpu.memory_space<vmem>>, vector<1x16xf32>,
    } else {
    }
    %c0_i32_6 = arith.constant 0 : i32
    %17 = arith.cmpi sgt, %arg0, %c0_i32_6 : i32
    %18 = arith.extui %17 : i1 to i32
    %c0_i32_7 = arith.constant 0 : i32
    %19 = arith.cmpi ne, %18, %c0_i32_7 : i32
    scf.if %19 {
      %c0_19 = arith.constant 0 : index
      %c0_20 = arith.constant 0 : index
      %32 = vector.load %arg9[%c0_19, %c0_20] : memref<1x16xf32, #tpu.memory_space<vmem>>, vector<1x16xf32>
      %33 = arith.addf %32, %13 : vector<1x16xf32>
      %c0_21 = arith.constant 0 : index
      %c0_22 = arith.constant 0 : index
      %34 = vector.load %arg9[%c0_21, %c0_22] : memref<1x16xf32, #tpu.memory_space<vmem>>, vector<1x16xf32>
      tpu.vector_store %arg9[%c0_21, %c0_22], %33 {strides = array<i32>} : memref<1x16xf32, #tpu.memory_space<vmem>>, vector<1x16xf32>,
    } else {
    }
    %c0_8 = arith.constant 0 : index
    %c0_9 = arith.constant 0 : index
    %20 = vector.load %arg4[%c0_8, %c0_9] : memref<8x16xf32, #tpu.memory_space<vmem>>, vector<8x16xf32>
    %c0_10 = arith.constant 0 : index
    %c0_11 = arith.constant 0 : index
    %21 = vector.load %arg5[%c0_10, %c0_11] : memref<2x16xf32, #tpu.memory_space<vmem>>, vector<2x16xf32>
    %c0_12 = arith.constant 0 : index
    %c0_13 = arith.constant 0 : index
    %22 = vector.load %arg6[%c0_12, %c0_13] : memref<16x2xf32, #tpu.memory_space<vmem>>, vector<16x2xf32>
    %c0_i32_14 = arith.constant 0 : i32
    %23 = arith.cmpi eq, %arg0, %c0_i32_14 : i32
    %24 = arith.extui %23 : i1 to i32
    %c0_i32_15 = arith.constant 0 : i32
    %25 = arith.cmpi ne, %24, %c0_i32_15 : i32
    scf.if %25 {
      %32 = vector.extract_strided_slice %1 {offsets = [6, 0], sizes = [1, 16], strides = [1, 1]} : vector<8x16xf32> to vector<1x16xf32>
      %33 = vector.broadcast %32 : vector<1x16xf32> to vector<8x16xf32>
      %34 = arith.mulf %33, %20 : vector<8x16xf32>
      %cst_19 = arith.constant dense<0.000000e+00> : vector<8x2xf32>
      %35 = tpu.matmul %34, %22, %cst_19 {dimension_numbers = #tpu.dot_dimension_numbers<[1], [0], [0], [1], [0, 0, 1, 1], [], []>} : vector<8x16xf32>, vector<16x2xf32>, vector<8x2xf32> -> vector<8x2xf32>
      %c0_20 = arith.constant 0 : index
      %c0_21 = arith.constant 0 : index
      %36 = vector.load %arg8[%c0_20, %c0_21] : memref<8x2xf32, #tpu.memory_space<vmem>>, vector<8x2xf32>
      tpu.vector_store %arg8[%c0_20, %c0_21], %35 {strides = array<i32>} : memref<8x2xf32, #tpu.memory_space<vmem>>, vector<8x2xf32>,
    } else {
    }
    %c0_i32_16 = arith.constant 0 : i32
    %26 = arith.cmpi sgt, %arg0, %c0_i32_16 : i32
    %27 = arith.extui %26 : i1 to i32
    %c0_i32_17 = arith.constant 0 : i32
    %28 = arith.cmpi ne, %27, %c0_i32_17 : i32
    scf.if %28 {
      %c0_19 = arith.constant 0 : index
      %c0_20 = arith.constant 0 : index
      %32 = vector.load %arg8[%c0_19, %c0_20] : memref<8x2xf32, #tpu.memory_space<vmem>>, vector<8x2xf32>
      %cst_21 = arith.constant dense<0.000000e+00> : vector<8x16xf32>
      %33 = tpu.matmul %32, %21, %cst_21 {dimension_numbers = #tpu.dot_dimension_numbers<[1], [0], [0], [1], [0, 0, 1, 1], [], []>} : vector<8x2xf32>, vector<2x16xf32>, vector<8x16xf32> -> vector<8x16xf32>
      %34 = arith.addf %1, %33 : vector<8x16xf32>
      %cst_22 = arith.constant dense<0xFF800000> : vector<16xf32>
      %35 = vector.multi_reduction <maximumf>, %34, %cst_22 [0] : vector<8x16xf32> to vector<16xf32>
      %36 = vector.shape_cast %35 : vector<16xf32> to vector<1x16xf32>
      %37 = vector.broadcast %36 : vector<1x16xf32> to vector<8x16xf32>
      %38 = arith.subf %34, %37 : vector<8x16xf32>
      %39 = math.exp %38 : vector<8x16xf32>
      %cst_23 = arith.constant dense<0.000000e+00> : vector<16xf32>
      %40 = vector.multi_reduction <add>, %39, %cst_23 [0] : vector<8x16xf32> to vector<16xf32>
      %41 = vector.shape_cast %40 : vector<16xf32> to vector<1x16xf32>
      %42 = math.log %41 : vector<1x16xf32>
      %43 = arith.addf %42, %36 : vector<1x16xf32>
      %44 = vector.broadcast %43 : vector<1x16xf32> to vector<8x16xf32>
      %45 = arith.mulf %44, %20 : vector<8x16xf32>
      %cst_24 = arith.constant dense<0.000000e+00> : vector<8x2xf32>
      %46 = tpu.matmul %45, %22, %cst_24 {dimension_numbers = #tpu.dot_dimension_numbers<[1], [0], [0], [1], [0, 0, 1, 1], [], []>} : vector<8x16xf32>, vector<16x2xf32>, vector<8x2xf32> -> vector<8x2xf32>
      %c0_25 = arith.constant 0 : index
      %c0_26 = arith.constant 0 : index
      %c0_27 = arith.constant 0 : index
      %47 = vector.load %arg3[%c0_25, %c0_26, %c0_27] : memref<1x1x2xf32, #tpu.memory_space<vmem>>, vector<1x1x2xf32>
      %48 = vector.shape_cast %47 : vector<1x1x2xf32> to vector<1x2xf32>
      %cst_28 = arith.constant 0.000000e+00 : f32
      %49 = vector.broadcast %cst_28 : f32 to vector<1x2xf32>
      %50 = arith.cmpf ogt, %48, %49 : vector<1x2xf32>
      %51 = vector.shape_cast %50 : vector<1x2xi1> to vector<1x2xi1>
      %52 = vector.broadcast %51 : vector<1x2xi1> to vector<8x2xi1>
      %53 = arith.select %52, %46, %32 : vector<8x2xi1>, vector<8x2xf32>
      %c0_29 = arith.constant 0 : index
      %c0_30 = arith.constant 0 : index
      %54 = vector.load %arg8[%c0_29, %c0_30] : memref<8x2xf32, #tpu.memory_space<vmem>>, vector<8x2xf32>
      tpu.vector_store %arg8[%c0_29, %c0_30], %53 {strides = array<i32>} : memref<8x2xf32, #tpu.memory_space<vmem>>, vector<8x2xf32>,
    } else {
    }
    %c7_i32 = arith.constant 7 : i32
    %29 = arith.cmpi eq, %arg0, %c7_i32 : i32
    %30 = arith.extui %29 : i1 to i32
    %c0_i32_18 = arith.constant 0 : i32
    %31 = arith.cmpi ne, %30, %c0_i32_18 : i32
    scf.if %31 {
      %c0_19 = arith.constant 0 : index
      %c0_20 = arith.constant 0 : index
      %32 = vector.load %arg8[%c0_19, %c0_20] : memref<8x2xf32, #tpu.memory_space<vmem>>, vector<8x2xf32>
      %33 = vector.extract_strided_slice %32 {offsets = [7, 0], sizes = [1, 2], strides = [1, 1]} : vector<8x2xf32> to vector<1x2xf32>
      %34 = vector.shape_cast %33 : vector<1x2xf32> to vector<2xf32>
      %35 = vector.shape_cast %34 : vector<2xf32> to vector<1x2xf32>
      %cst_21 = arith.constant dense<0.000000e+00> : vector<1xf32>
      %36 = vector.multi_reduction <add>, %35, %cst_21 [1] : vector<1x2xf32> to vector<1xf32>
      %37 = vector.shape_cast %36 : vector<1xf32> to vector<1x1xf32>
      %38 = vector.extract %37[0, 0] : f32 from vector<1x1xf32>
      %c0_22 = arith.constant 0 : index
      %c0_23 = arith.constant 0 : index
      %39 = vector.load %arg9[%c0_22, %c0_23] : memref<1x16xf32, #tpu.memory_space<vmem>>, vector<1x16xf32>
      %40 = vector.shape_cast %39 : vector<1x16xf32> to vector<1x1x16xf32>
      %cst_24 = arith.constant dense<0.000000e+00> : vector<1xf32>
      %41 = vector.multi_reduction <add>, %40, %cst_24 [1, 2] : vector<1x1x16xf32> to vector<1xf32>
      %42 = vector.shape_cast %41 : vector<1xf32> to vector<1x1x1xf32>
      %43 = vector.extract %42[0, 0, 0] : f32 from vector<1x1x1xf32>
      %44 = arith.subf %38, %43 : f32
      %cst_25 = arith.constant 2.000000e+00 : f32
      %45 = arith.divf %44, %cst_25 : f32
      %c0_26 = arith.constant 0 : index
      %c0_27 = arith.constant 0 : index
      %46 = memref.load %arg7[%c0_26, %c0_27] : memref<1x1xf32, #tpu.memory_space<smem>>
      memref.store %45, %arg7[%c0_26, %c0_27] : memref<1x1xf32, #tpu.memory_space<smem>>
    } else {
    }
    return
  }
  func.func @transform_0(%arg0: i32) -> (i32, i32, i32) {
    %c0_i32 = arith.constant 0 : i32
    %c0_i32_0 = arith.constant 0 : i32
    %c0_i32_1 = arith.constant 0 : i32
    return %arg0, %c0_i32, %c0_i32_0 : i32, i32, i32
  }
  func.func @transform_1(%arg0: i32) -> (i32, i32, i32) {
    %c0_i32 = arith.constant 0 : i32
    %c0_i32_0 = arith.constant 0 : i32
    %c0_i32_1 = arith.constant 0 : i32
    return %arg0, %c0_i32, %c0_i32_0 : i32, i32, i32
  }
  func.func @transform_2(%arg0: i32) -> (i32, i32, i32) {
    %c0_i32 = arith.constant 0 : i32
    %c0_i32_0 = arith.constant 0 : i32
    %c0_i32_1 = arith.constant 0 : i32
    return %arg0, %c0_i32, %c0_i32_0 : i32, i32, i32
  }
  func.func @transform_3(%arg0: i32) -> (i32, i32) {
    %c0_i32 = arith.constant 0 : i32
    %c0_i32_0 = arith.constant 0 : i32
    %c0_i32_1 = arith.constant 0 : i32
    return %c0_i32, %c0_i32_0 : i32, i32
  }
  func.func @transform_4(%arg0: i32) -> (i32, i32) {
    %c0_i32 = arith.constant 0 : i32
    %c0_i32_0 = arith.constant 0 : i32
    %c0_i32_1 = arith.constant 0 : i32
    return %c0_i32, %c0_i32_0 : i32, i32
  }
  func.func @transform_5(%arg0: i32) -> (i32, i32) {
    %c0_i32 = arith.constant 0 : i32
    %c0_i32_0 = arith.constant 0 : i32
    %c0_i32_1 = arith.constant 0 : i32
    return %c0_i32, %c0_i32_0 : i32, i32
  }
  func.func @transform_6(%arg0: i32) -> (i32, i32) {
    %c0_i32 = arith.constant 0 : i32
    %c0_i32_0 = arith.constant 0 : i32
    %c0_i32_1 = arith.constant 0 : i32
    return %c0_i32, %c0_i32_0 : i32, i32
  }
}

</mosaic_0001>

<llo_original>
// kernel: tpu_custom_call.1
$region0: #{tpu_custom_call.1}
  #allocation0 [shape = 'u32[]', space=smem, size = 0x4, offset = 0x4, fixed_abs, tag = 'smem constant byte address 0x4 - core index']
  #allocation1 [shape = 'u32[72,128]{1,0:T(1,128)}', space=vmem, size = 0x9000, scoped, tag = 'internal scratch']
  #allocation2 [shape = 'f32[8,2]{1,0:T(8,128)}', space=vmem, size = 0x1000, scoped, tag = 'scratch operand']
  #allocation3 [shape = 'f32[1,16]{1,0:T(1,128)}', space=vmem, size = 0x200, scoped, tag = 'scratch operand']
  %s0 = inlined_call_operand.hbm [shape: f32[8,8,16], index: 0, kind: input, shape index: {}]
  %s1 = inlined_call_operand.vmem [shape: s32[8,1,16], index: 1, kind: input, shape index: {}]
  %s2 = inlined_call_operand.vmem [shape: f32[8,1,2], index: 2, kind: input, shape index: {}]
  %s3 = inlined_call_operand.vmem [shape: f32[8,16], index: 3, kind: input, shape index: {}]
  %s4 = inlined_call_operand.vmem [shape: f32[2,16], index: 4, kind: input, shape index: {}]
  %s5 = inlined_call_operand.vmem [shape: f32[16,2], index: 5, kind: input, shape index: {}]
  %s6 = inlined_call_operand.hbm [shape: f32[1,1], index: 6, kind: output, shape index: {}]
  %s7 = sld [smem:[#allocation0]]
  $region81: #{tpu_custom_call.1} parent=0
    _
  %s9 = ssub.s32 1, %s7
  %s10 = scalar_select 0, %s9, %s7
  $region1: #{tpu_custom_call.1} parent=0
    #allocation4 [shape = 'u8[8192]{0}', space=vmem, size = 0x2000, scoped, tag = 'input window, operand 0']
    #allocation5 [shape = 's32[2]{0}', space=sflag, size = 0x8, scoped, tag = 'scoped memory for tpu_custom_call.1']
    #allocation6 [shape = 's32[2]{0}', space=sflag, size = 0x8, scoped, tag = 'scoped memory for tpu_custom_call.1']
    #allocation7 [shape = 'u8[512]{0}', space=smem, size = 0x200, scoped, tag = 'output window, operand 0, single buffered']
    %11 = vsyncpa [#allocation5], 0
    %s12 = scalar_lea.sflag [#allocation5], 1
    %13 = vsyncpa %s12, 0
    %14 = vsyncpa [#allocation6], 0
    loop: start=0, step=1, limit=10
    $region2: #{tpu_custom_call.1} parent=1 // loop_pre_header
      _
    $region3: #{tpu_custom_call.1} parent=1 // loop_header
      %s16 = sphi 0, %s20
      %p17 = scmp.ge.s32.totalorder %s16, 10
      %s26 = sphi 0, %s28
      %s29 = sphi 0, %s26
      %s30 = sphi 0, %s29
      %s46 = sphi 0, %s30
      %s52 = sphi 0, %s54
      %s55 = sphi 0, %s52
      %s56 = sphi 0, %s55
      %s72 = sphi 0, %s56
      %s78 = sphi 0, %s80
      %s81 = sphi 0, %s78
      %s82 = sphi 0, %s81
      %s98 = sphi 0, %s82
      %s102 = sphi 0, %s102
      %s104 = sphi 0, %s102
      %s105 = sphi 0, %s104
      %s119 = sphi 0, %s105
      %s123 = sphi 0, %s123
      %s125 = sphi 0, %s123
      %s126 = sphi 0, %s125
      %s140 = sphi 0, %s126
      %s144 = sphi 0, %s144
      %s146 = sphi 0, %s144
      %s147 = sphi 0, %s146
      %s161 = sphi 0, %s147
      %s165 = sphi 0, %s165
      %s167 = sphi 0, %s165
      %s168 = sphi 0, %s167
      %s182 = sphi 0, %s168
    $region4: #{tpu_custom_call.1} parent=1 // loop_header_branch
      %19 = sbr.rel (%p17) target = $region8
    $region5: #{tpu_custom_call.1} parent=1 // loop_body
      %s21 = ssub.s32 %s16, 1
      %s22 = ssub.s32 %s16, 2
      %s23 = sadd.s32 %s16, 1
      %s24 = ssub.s32 %s16, %s23
      %p25 = scmp.eq.s32.totalorder %s24, 0
      %s27 = sadd.s32 %s26, 1
      %s28 = scalar_select %p25, %s26, %s27
      %p31 = pneg %p25
      %p32 = scmp.eq.s32.totalorder %s16, 7
      %p33 = por %p31, %p32
      %p34 = scmp.ne.s32.totalorder %s26, %s29
      %p35 = scmp.eq.s32.totalorder %s16, 0
      %p36 = por %p34, %p35
      %p37 = scmp.ne.s32.totalorder %s26, %s29
      %p38 = scmp.eq.s32.totalorder %s21, 7
      %p39 = por %p37, %p38
      %p40 = scmp.ne.s32.totalorder %s29, %s30
      %p41 = scmp.eq.s32.totalorder %s21, 0
      %p42 = por %p40, %p41
      %p43 = scmp.ne.s32.totalorder %s29, %s30
      %p44 = scmp.eq.s32.totalorder %s22, 7
      %p45 = por %p43, %p44
      %p47 = scmp.ne.s32.totalorder %s30, %s46
      %p48 = scmp.eq.s32.totalorder %s22, 0
      %p49 = por %p47, %p48
      %s50 = ssub.s32 %s16, %s23
      %p51 = scmp.eq.s32.totalorder %s50, 0
      %s53 = sadd.s32 %s52, 1
      %s54 = scalar_select %p51, %s52, %s53
      %p57 = pneg %p51
      %p58 = scmp.eq.s32.totalorder %s16, 7
      %p59 = por %p57, %p58
      %p60 = scmp.ne.s32.totalorder %s52, %s55
      %p61 = scmp.eq.s32.totalorder %s16, 0
      %p62 = por %p60, %p61
      %p63 = scmp.ne.s32.totalorder %s52, %s55
      %p64 = scmp.eq.s32.totalorder %s21, 7
      %p65 = por %p63, %p64
      %p66 = scmp.ne.s32.totalorder %s55, %s56
      %p67 = scmp.eq.s32.totalorder %s21, 0
      %p68 = por %p66, %p67
      %p69 = scmp.ne.s32.totalorder %s55, %s56
      %p70 = scmp.eq.s32.totalorder %s22, 7
      %p71 = por %p69, %p70
      %p73 = scmp.ne.s32.totalorder %s56, %s72
      %p74 = scmp.eq.s32.totalorder %s22, 0
      %p75 = por %p73, %p74
      %s76 = ssub.s32 %s16, %s23
      %p77 = scmp.eq.s32.totalorder %s76, 0
      %s79 = sadd.s32 %s78, 1
      %s80 = scalar_select %p77, %s78, %s79
      %p83 = pneg %p77
      %p84 = scmp.eq.s32.totalorder %s16, 7
      %p85 = por %p83, %p84
      %p86 = scmp.ne.s32.totalorder %s78, %s81
      %p87 = scmp.eq.s32.totalorder %s16, 0
      %p88 = por %p86, %p87
      %p89 = scmp.ne.s32.totalorder %s78, %s81
      %p90 = scmp.eq.s32.totalorder %s21, 7
      %p91 = por %p89, %p90
      %p92 = scmp.ne.s32.totalorder %s81, %s82
      %p93 = scmp.eq.s32.totalorder %s21, 0
      %p94 = por %p92, %p93
      %p95 = scmp.ne.s32.totalorder %s81, %s82
      %p96 = scmp.eq.s32.totalorder %s22, 7
      %p97 = por %p95, %p96
      %p99 = scmp.ne.s32.totalorder %s82, %s98
      %p100 = scmp.eq.s32.totalorder %s22, 0
      %p101 = por %p99, %p100
      %s103 = sadd.s32 %s102, 1
      %p106 = scmp.eq.s32.totalorder %s16, 7
      %p107 = scmp.ne.s32.totalorder %s102, %s104
      %p108 = scmp.eq.s32.totalorder %s16, 0
      %p109 = por %p107, %p108
      %p110 = scmp.ne.s32.totalorder %s102, %s104
      %p111 = scmp.eq.s32.totalorder %s21, 7
      %p112 = por %p110, %p111
      %p113 = scmp.ne.s32.totalorder %s104, %s105
      %p114 = scmp.eq.s32.totalorder %s21, 0
      %p115 = por %p113, %p114
      %p116 = scmp.ne.s32.totalorder %s104, %s105
      %p117 = scmp.eq.s32.totalorder %s22, 7
      %p118 = por %p116, %p117
      %p120 = scmp.ne.s32.totalorder %s105, %s119
      %p121 = scmp.eq.s32.totalorder %s22, 0
      %p122 = por %p120, %p121
      %s124 = sadd.s32 %s123, 1
      %p127 = scmp.eq.s32.totalorder %s16, 7
      %p128 = scmp.ne.s32.totalorder %s123, %s125
      %p129 = scmp.eq.s32.totalorder %s16, 0
      %p130 = por %p128, %p129
      %p131 = scmp.ne.s32.totalorder %s123, %s125
      %p132 = scmp.eq.s32.totalorder %s21, 7
      %p133 = por %p131, %p132
      %p134 = scmp.ne.s32.totalorder %s125, %s126
      %p135 = scmp.eq.s32.totalorder %s21, 0
      %p136 = por %p134, %p135
      %p137 = scmp.ne.s32.totalorder %s125, %s126
      %p138 = scmp.eq.s32.totalorder %s22, 7
      %p139 = por %p137, %p138
      %p141 = scmp.ne.s32.totalorder %s126, %s140
      %p142 = scmp.eq.s32.totalorder %s22, 0
      %p143 = por %p141, %p142
      %s145 = sadd.s32 %s144, 1
      %p148 = scmp.eq.s32.totalorder %s16, 7
      %p149 = scmp.ne.s32.totalorder %s144, %s146
      %p150 = scmp.eq.s32.totalorder %s16, 0
      %p151 = por %p149, %p150
      %p152 = scmp.ne.s32.totalorder %s144, %s146
      %p153 = scmp.eq.s32.totalorder %s21, 7
      %p154 = por %p152, %p153
      %p155 = scmp.ne.s32.totalorder %s146, %s147
      %p156 = scmp.eq.s32.totalorder %s21, 0
      %p157 = por %p155, %p156
      %p158 = scmp.ne.s32.totalorder %s146, %s147
      %p159 = scmp.eq.s32.totalorder %s22, 7
      %p160 = por %p158, %p159
      %p162 = scmp.ne.s32.totalorder %s147, %s161
      %p163 = scmp.eq.s32.totalorder %s22, 0
      %p164 = por %p162, %p163
      %s166 = sadd.s32 %s165, 1
      %p169 = scmp.eq.s32.totalorder %s16, 7
      %p170 = scmp.ne.s32.totalorder %s165, %s167
      %p171 = scmp.eq.s32.totalorder %s16, 0
      %p172 = por %p170, %p171
      %p173 = scmp.ne.s32.totalorder %s165, %s167
      %p174 = scmp.eq.s32.totalorder %s21, 7
      %p175 = por %p173, %p174
      %p176 = scmp.ne.s32.totalorder %s167, %s168
      %p177 = scmp.eq.s32.totalorder %s21, 0
      %p178 = por %p176, %p177
      %p179 = scmp.ne.s32.totalorder %s167, %s168
      %p180 = scmp.eq.s32.totalorder %s22, 7
      %p181 = por %p179, %p180
      %p183 = scmp.ne.s32.totalorder %s168, %s182
      %p184 = scmp.eq.s32.totalorder %s22, 0
      %p185 = por %p183, %p184
      %p186 = scmp.le.s32.totalorder 1, %s16
      %p187 = scmp.lt.s32.totalorder %s16, 9
      %p188 = pnand %p186, %p187
      %p189 = pneg %p188
      // Predicated region
      $region9: #{tpu_custom_call.1} parent=5 // pred_check
        _
      $region10: #{tpu_custom_call.1} parent=5 // pred_check_branch
        %191 = sbr.rel (%p188) target = $region12
      $region11: #{tpu_custom_call.1} parent=5 // pred_region
        %s192 = ssub.s32 %s16, 1
        // Predicated region
        $region13: #{tpu_custom_call.1} parent=11 // pred_check
          %p193 = pneg %p115
        $region14: #{tpu_custom_call.1} parent=11 // pred_check_branch
          %195 = sbr.rel (%p193) target = $region16
        $region15: #{tpu_custom_call.1} parent=11 // pred_region
          _
        $region16: #{tpu_custom_call.1} parent=11 // pred_fallthru
          _
        // Predicated region
        $region17: #{tpu_custom_call.1} parent=11 // pred_check
          %p196 = pneg %p136
        $region18: #{tpu_custom_call.1} parent=11 // pred_check_branch
          %198 = sbr.rel (%p196) target = $region20
        $region19: #{tpu_custom_call.1} parent=11 // pred_region
          _
        $region20: #{tpu_custom_call.1} parent=11 // pred_fallthru
          _
        // Predicated region
        $region21: #{tpu_custom_call.1} parent=11 // pred_check
          %p199 = pneg %p157
        $region22: #{tpu_custom_call.1} parent=11 // pred_check_branch
          %201 = sbr.rel (%p199) target = $region24
        $region23: #{tpu_custom_call.1} parent=11 // pred_region
          _
        $region24: #{tpu_custom_call.1} parent=11 // pred_fallthru
          _
      $region12: #{tpu_custom_call.1} parent=5 // pred_fallthru
        _
      %p202 = scmp.lt.s32.totalorder %s16, 8
      // Predicated region
      $region25: #{tpu_custom_call.1} parent=5 // pred_check
        %p203 = pneg %p202
      $region26: #{tpu_custom_call.1} parent=5 // pred_check_branch
        %205 = sbr.rel (%p203) target = $region28
      $region27: #{tpu_custom_call.1} parent=5 // pred_region
        // Predicated region
        $region29: #{tpu_custom_call.1} parent=27 // pred_check
          %p206 = pneg %p36
        $region30: #{tpu_custom_call.1} parent=27 // pred_check_branch
          %208 = sbr.rel (%p206) target = $region32
        $region31: #{tpu_custom_call.1} parent=27 // pred_region
          %s209 = sand.u32 %s26, 1
          %s210 = scalar_lea.sflag [#allocation5], %s209
          %s211 = sand.u32 %s26, 1
          %s212 = smul.addr %s211, 8
          %s213 = scalar_lea.vmem [#allocation4], %s212
          %215 = vsyncadd %s210, 0
          %s216 = smul.addr %s16, 8
          %s217 = scalar_lea.hbm %s0, %s216
          %s219 = sshll.u32 %s217, 4
          %s220 = int_to_ptr.hbm [resolvable:$true] %s219
          %s221 = sshll.u32 %s213, 4
          %s222 = int_to_ptr.vmem [resolvable:$true] %s221
          %224 = dma.hbm_to_vmem [thread:$0]  %s220, 128, %s222, %s210
        $region32: #{tpu_custom_call.1} parent=27 // pred_fallthru
          _
        // Predicated region
        $region33: #{tpu_custom_call.1} parent=27 // pred_check
          %p225 = pneg %p62
        $region34: #{tpu_custom_call.1} parent=27 // pred_check_branch
          %227 = sbr.rel (%p225) target = $region36
        $region35: #{tpu_custom_call.1} parent=27 // pred_region
          %p228 = scmp.lt.s32.totalorder %s16, 7
          %s229 = scalar_select %p228, %s16, 7
          %s230 = scalar_lea.vmem %s1, %s229
        $region36: #{tpu_custom_call.1} parent=27 // pred_fallthru
          _
        // Predicated region
        $region37: #{tpu_custom_call.1} parent=27 // pred_check
          %p231 = pneg %p88
        $region38: #{tpu_custom_call.1} parent=27 // pred_check_branch
          %233 = sbr.rel (%p231) target = $region40
        $region39: #{tpu_custom_call.1} parent=27 // pred_region
          %p234 = scmp.lt.s32.totalorder %s16, 7
          %s235 = scalar_select %p234, %s16, 7
          %s236 = scalar_lea.vmem %s2, %s235
        $region40: #{tpu_custom_call.1} parent=27 // pred_fallthru
          _
      $region28: #{tpu_custom_call.1} parent=5 // pred_fallthru
        _
      %p237 = scmp.le.s32.totalorder 1, %s16
      %p238 = scmp.lt.s32.totalorder %s16, 9
      %p239 = pnand %p237, %p238
      %p240 = pneg %p239
      // Predicated region
      $region41: #{tpu_custom_call.1} parent=5 // pred_check
        _
      $region42: #{tpu_custom_call.1} parent=5 // pred_check_branch
        %242 = sbr.rel (%p239) target = $region44
      $region43: #{tpu_custom_call.1} parent=5 // pred_region
        %s243 = ssub.s32 %s16, 1
        %s244 = sand.u32 %s29, 1
        %s245 = scalar_lea.sflag [#allocation5], %s244
        %s246 = sand.u32 %s29, 1
        %s247 = smul.addr %s246, 8
        %s248 = scalar_lea.vmem [#allocation4], %s247
        // Predicated region
        $region45: #{tpu_custom_call.1} parent=43 // pred_check
          %p249 = pneg %p42
        $region46: #{tpu_custom_call.1} parent=43 // pred_check_branch
          %251 = sbr.rel (%p249) target = $region48
        $region47: #{tpu_custom_call.1} parent=43 // pred_region
          %253 = dma.done %s245, 128
        $region48: #{tpu_custom_call.1} parent=43 // pred_fallthru
          _
        %s254 = sand.u32 %s29, 1
        %s255 = scalar_lea.sflag [#allocation5], %s254
        %s256 = sand.u32 %s29, 1
        %s257 = smul.addr %s256, 8
        %s258 = scalar_lea.vmem [#allocation4], %s257
        %p259 = pneg %p42
        %p260 = pneg %p39
        %p261 = scmp.lt.s32.totalorder %s21, 7
        %s262 = scalar_select %p261, %s21, 7
        %s263 = scalar_lea.vmem %s1, %s262
        %p264 = pneg %p68
        %p265 = pneg %p65
        %p266 = scmp.lt.s32.totalorder %s21, 7
        %s267 = scalar_select %p266, %s21, 7
        %s268 = scalar_lea.vmem %s2, %s267
        %p269 = pneg %p94
        %p270 = pneg %p91
        %p271 = pneg %p115
        %p272 = pneg %p112
        %p273 = pneg %p136
        %p274 = pneg %p133
        %p275 = pneg %p157
        %p276 = pneg %p154
        %p277 = pneg %p178
        %p278 = pneg %p175
        %p279 = scmp.lt.s32.totalorder %s21, 7
        %s280 = scalar_select %p279, %s21, 7
        %s281 = scalar_lea.vmem %s1, %s280
        %p282 = scmp.lt.s32.totalorder %s21, 7
        %s283 = scalar_select %p282, %s21, 7
        %s284 = scalar_lea.vmem %s2, %s283
        %v285 = vld [vmem:[%s248] sm:$0xff]
        %v286 = vlaneseq
        %v287 = vshrl.u32 %v286, 7
        %v288 = vmul.u32 %v287, 8
        %v289 = vld [vmem:[%s281] sm:$0x1]
        %v290 = vperm.slane %v289, 0
        %vm291 = vcmp.eq.s32.totalorder %v288, %v290
        %v292 = vsel %vm291, 1, 0
        %v293 = vcvt.s32.f32 %v292
        %v294 = vmul.f32 %v285, %v293
        %vm295 = vcmask 130048
        %v296 = vsel %vm295, %v294, 0.0
        %v297 = vrot.slane %v296, 4
        %v298 = vadd.f32 %v296, %v297
        %v299 = vrot.slane %v298, 2
        %v300 = vadd.f32 %v298, %v299
        %v301 = vrot.slane %v300, 1
        %v302 = vadd.f32 %v300, %v301
        %p303 = scmp.eq.s32.totalorder %s21, 0
        // Predicated region
        $region49: #{tpu_custom_call.1} parent=43 // pred_check
          %p304 = pneg %p303
        $region50: #{tpu_custom_call.1} parent=43 // pred_check_branch
          %306 = sbr.rel (%p304) target = $region52
        $region51: #{tpu_custom_call.1} parent=43 // pred_region
          %vm307 = vcmask 122880
          %308 = vst.msk [vmem:[#allocation3] sm:$0x1] %vm307, %v302
        $region52: #{tpu_custom_call.1} parent=43 // pred_fallthru
          _
        %p309 = scmp.gt.s32.totalorder %s21, 0
        // Predicated region
        $region53: #{tpu_custom_call.1} parent=43 // pred_check
          %p310 = pneg %p309
        $region54: #{tpu_custom_call.1} parent=43 // pred_check_branch
          %312 = sbr.rel (%p310) target = $region56
        $region55: #{tpu_custom_call.1} parent=43 // pred_region
          %v313 = vld [vmem:[#allocation3] sm:$0x1]
          %v314 = vadd.f32 %v313, %v302
          %vm315 = vcmask 122880
          %316 = vst.msk [vmem:[#allocation3] sm:$0x1] %vm315, %v314
        $region56: #{tpu_custom_call.1} parent=43 // pred_fallthru
          _
        %v317 = vld [vmem:[%s3] sm:$0xff]
        %v318 = vld [vmem:[%s4] sm:$0x3]
        %v319 = vld [vmem:[%s5] sm:$0xff]
        %v320 = vld [vmem:[%s5 + $0x8] sm:$0xff]
        // Predicated region
        $region57: #{tpu_custom_call.1} parent=43 // pred_check
          %p321 = pneg %p303
        $region58: #{tpu_custom_call.1} parent=43 // pred_check_branch
          %323 = sbr.rel (%p321) target = $region60
        $region59: #{tpu_custom_call.1} parent=43 // pred_region
          %v324 = vperm.slane %v285, 6
          %v325 = vmul.f32 %v324, %v317
          %v327 = vsel %vm295, %v325, 0
          %329 = vmatpush.msra.mxu0 0.0
          %330 = vmatpush.msra.mxu0 0.0
          %331 = vmatpush.msra.mxu0 0.0
          %332 = vmatpush.msra.mxu0 0.0
          %333 = vmatpush.msra.mxu0 0.0
          %334 = vmatpush.msra.mxu0 0.0
          %335 = vmatpush.msra.mxu0 0.0
          %336 = vmatpush.msra.mxu0 0.0
          %337 = vmatpush.msra.mxu0 0.0
          %338 = vmatpush.msra.mxu0 0.0
          %339 = vmatpush.msra.mxu0 0.0
          %340 = vmatpush.msra.mxu0 0.0
          %341 = vmatpush.msra.mxu0 0.0
          %342 = vmatpush.msra.mxu0 0.0
          %343 = vmatpush.msra.mxu0 %v320
          %344 = vmatpush.msra.mxu0 %v319
          %345 = vmatmul.f32.gmra.mxu0 %v327
          %v346 = vpop.f32.mrf.mxu0
          %v347 = vadd.f32 0.0, %v346
          %348 = vdwg.mxu0
          %vm349 = vcmask 15360
          %350 = vst.msk [vmem:[#allocation2] sm:$0xff] %vm349, %v347
        $region60: #{tpu_custom_call.1} parent=43 // pred_fallthru
          _
        // Predicated region
        $region61: #{tpu_custom_call.1} parent=43 // pred_check
          %p351 = pneg %p309
        $region62: #{tpu_custom_call.1} parent=43 // pred_check_branch
          %353 = sbr.rel (%p351) target = $region64
        $region63: #{tpu_custom_call.1} parent=43 // pred_region
          %v354 = vld [vmem:[#allocation2] sm:$0xff]
          %vm355 = vcmask 15360
          %v357 = vsel %vm355, %v354, 0
          %vm359 = vcmask 1041408
          %v361 = vsel %vm359, %v318, 0
          %363 = vmatpush.msra.mxu0 0.0
          %364 = vmatpush.msra.mxu0 0.0
          %365 = vmatpush.msra.mxu0 0.0
          %366 = vmatpush.msra.mxu0 0.0
          %367 = vmatpush.msra.mxu0 0.0
          %368 = vmatpush.msra.mxu0 0.0
          %369 = vmatpush.msra.mxu0 0.0
          %370 = vmatpush.msra.mxu0 0.0
          %371 = vmatpush.msra.mxu0 0.0
          %372 = vmatpush.msra.mxu0 0.0
          %373 = vmatpush.msra.mxu0 0.0
          %374 = vmatpush.msra.mxu0 0.0
          %375 = vmatpush.msra.mxu0 0.0
          %376 = vmatpush.msra.mxu0 0.0
          %377 = vmatpush.msra.mxu0 0.0
          %378 = vmatpush.msra.mxu0 %v361
          %379 = vmatmul.f32.gmra.mxu0 %v357
          %v380 = vpop.f32.mrf.mxu0
          %v381 = vadd.f32 0.0, %v380
          %382 = vdwg.mxu0
          %v383 = vadd.f32 %v285, %v381
          %v384 = vsel %vm295, %v383, -inf
          %v385 = vrot.slane %v384, 4
          %v386 = vmax.f32 %v384, %v385
          %v387 = vrot.slane %v386, 2
          %v388 = vmax.f32 %v386, %v387
          %v389 = vrot.slane %v388, 1
          %v390 = vmax.f32 %v388, %v389
          %v391 = vsub.f32 %v383, %v390
          %v392 = vmul.f32 %v391, 1.442695
          %v393 = vpow.pop %v392
          %v394 = vsel %vm295, %v393, 0.0
          %v395 = vrot.slane %v394, 4
          %v396 = vadd.f32 %v394, %v395
          %v397 = vrot.slane %v396, 2
          %v398 = vadd.f32 %v396, %v397
          %v399 = vrot.slane %v398, 1
          %v400 = vadd.f32 %v398, %v399
          %v401 = vlog2.pop %v400
          %v402 = vmul.f32 %v401, 0.6931472
          %v403 = vadd.f32 %v402, %v390
          %v404 = vmul.f32 %v403, %v317
          %v406 = vsel %vm295, %v404, 0
          %408 = vmatpush.msra.mxu0 0.0
          %409 = vmatpush.msra.mxu0 0.0
          %410 = vmatpush.msra.mxu0 0.0
          %411 = vmatpush.msra.mxu0 0.0
          %412 = vmatpush.msra.mxu0 0.0
          %413 = vmatpush.msra.mxu0 0.0
          %414 = vmatpush.msra.mxu0 0.0
          %415 = vmatpush.msra.mxu0 0.0
          %416 = vmatpush.msra.mxu0 0.0
          %417 = vmatpush.msra.mxu0 0.0
          %418 = vmatpush.msra.mxu0 0.0
          %419 = vmatpush.msra.mxu0 0.0
          %420 = vmatpush.msra.mxu0 0.0
          %421 = vmatpush.msra.mxu0 0.0
          %422 = vmatpush.msra.mxu0 %v320
          %423 = vmatpush.msra.mxu0 %v319
          %424 = vmatmul.f32.gmra.mxu0 %v406
          %v425 = vpop.f32.mrf.mxu0
          %v426 = vadd.f32 0.0, %v425
          %427 = vdwg.mxu0
          %v428 = vld [vmem:[%s284] sm:$0x1]
          %vm429 = vcmp.gt.f32.partialorder %v428, 0.0
          %v430 = vsel %vm429, 1, 0
          %v431 = vperm.slane %v430, 0
          %vm432 = vcmp.eq.s32.totalorder %v431, 1
          %v433 = vsel %vm432, %v426, %v354
          %434 = vst.msk [vmem:[#allocation2] sm:$0xff] %vm355, %v433
        $region64: #{tpu_custom_call.1} parent=43 // pred_fallthru
          _
        %p435 = scmp.eq.s32.totalorder %s21, 7
        // Predicated region
        $region65: #{tpu_custom_call.1} parent=43 // pred_check
          %p436 = pneg %p435
        $region66: #{tpu_custom_call.1} parent=43 // pred_check_branch
          %438 = sbr.rel (%p436) target = $region68
        $region67: #{tpu_custom_call.1} parent=43 // pred_region
          %v439 = vld [vmem:[#allocation2] sm:$0xff]
          %vm440 = vcmask 15367
          %v441 = vsel %vm440, %v439, 0.0
          %442 = vadd.xlane.f32.xlu0 %v441
          %v443 = vpop.xlane.xlu0 %442
          %v445 = vrot.slane %v443, 7
          %s447 = vtos %v445
          %v448 = vld [vmem:[#allocation3] sm:$0x1]
          %vm449 = vcmask 122880
          %v450 = vsel %vm449, %v448, 0.0
          %451 = vadd.xlane.f32.xlu0 %v450
          %v452 = vpop.xlane.xlu0 %451
          %v453 = vrot.slane %v452, 4
          %v454 = vadd.f32 %v452, %v453
          %v455 = vrot.slane %v454, 2
          %v456 = vadd.f32 %v454, %v455
          %v457 = vrot.slane %v456, 1
          %v458 = vadd.f32 %v456, %v457
          %s459 = vtos %v458
          %s460 = ssub.f32 %s447, %s459
          %v461 = vrcp.pop 2.0
          %v462 = vmul.f32 2.0, %v461
          %v463 = vsub.f32 1.0, %v462
          %v464 = vmul.f32 %v461, %v463
          %v465 = vadd.f32 %v461, %v464
          %vm466 = vweird.f32 %v461
          %v467 = vsel %vm466, %v461, %v465
          %s468 = vtos %v467
          %s469 = smul.f32 %s460, %s468
          %s470 = scalar_lea.smem [#allocation7], 0
          %471 = sst [smem:[%s470]] %s469
        $region68: #{tpu_custom_call.1} parent=43 // pred_fallthru
          _
        // Predicated region
        $region69: #{tpu_custom_call.1} parent=43 // pred_check
          %p472 = pneg %p175
        $region70: #{tpu_custom_call.1} parent=43 // pred_check_branch
          %474 = sbr.rel (%p472) target = $region72
        $region71: #{tpu_custom_call.1} parent=43 // pred_region
          %476 = vsyncadd [#allocation6], 0
          %s478 = sshll.u32 %s6, 4
          %s479 = int_to_ptr.hbm [resolvable:$true] %s478
          %481 = dma.smem_to_hbm [#allocation7], 16, %s479, [#allocation6]
        $region72: #{tpu_custom_call.1} parent=43 // pred_fallthru
          _
        // Predicated region
        $region73: #{tpu_custom_call.1} parent=43 // pred_check
          %p482 = pneg %p175
        $region74: #{tpu_custom_call.1} parent=43 // pred_check_branch
          %484 = sbr.rel (%p482) target = $region76
        $region75: #{tpu_custom_call.1} parent=43 // pred_region
          %486 = dma.done [#allocation6], 16
        $region76: #{tpu_custom_call.1} parent=43 // pred_fallthru
          _
        %487 = sfence
      $region44: #{tpu_custom_call.1} parent=5 // pred_fallthru
        _
      %p488 = scmp.le.s32.totalorder 2, %s16
      // Predicated region
      $region77: #{tpu_custom_call.1} parent=5 // pred_check
        %p489 = pneg %p488
      $region78: #{tpu_custom_call.1} parent=5 // pred_check_branch
        %491 = sbr.rel (%p489) target = $region80
      $region79: #{tpu_custom_call.1} parent=5 // pred_region
        %s492 = ssub.s32 %s16, 2
      $region80: #{tpu_custom_call.1} parent=5 // pred_fallthru
        _
    $region6: #{tpu_custom_call.1} parent=1 // loop_footer
      %s20 = sadd.s32 1, %s16
    $region7: #{tpu_custom_call.1} parent=1 // loop_footer_branch
      %15 = sbr.rel target = $region3
    $region8: #{tpu_custom_call.1} parent=1 // loop_exit
      _
    %493 = vsyncpa [#allocation5], 1
    %s494 = scalar_lea.sflag [#allocation5], 1
    %495 = vsyncpa %s494, 1
    %496 = vsyncpa [#allocation6], 1
    %s497 = scalar_lea.sflag [#allocation6], 1
    %498 = vsyncpa %s497, 1

</llo_original>
